<compile_context>
chip_gen: v7x
topology: tpu7x:2x2x1
jax: 0.10.0
libtpu: 0.0.40
codegen_flags: <defaults>
</compile_context>

<pallas_src>
import jax
import jax.numpy as jnp
from jax.experimental import pallas as pl
from jax.experimental.pallas import tpu as pltpu

NATIVE_GRADIENT = True


# --------------------------------------------------------------------------
# Pallas kernel: batched Gauss-Jordan solve of  Jacob^T G = grad
# --------------------------------------------------------------------------
def _jacob_solve_kernel(a_ref, g_ref, o_ref):
    # a_ref: (D, D, TB) tile of M = Jacob^T in (row, col, batch-lane) layout.
    #        Eliminated IN PLACE (input VMEM block is a private per-step copy).
    # g_ref: (D, TB) right-hand sides, batch on lanes (f32).
    # o_ref: (D, TB) solutions; used directly as the working RHS buffer.
    o_ref[...] = g_ref[...]
    d = a_ref.shape[0]
    # Static unroll: D is small for these flow-layer Jacobians (demo D=8).
    # TODO(synk): for D >~ 16-32 switch to a blocked elimination (MXU trailing
    #             update) driven by lax.fori_loop, and add partial pivoting —
    #             this unpivoted Gauss-Jordan assumes well-conditioned
    #             (e.g. diagonally dominant) Jacobians.
    # TODO(synk): PyTorch promotes to float64 for torch.solve; TPU has no f64,
    #             so the solve runs in float32.
    for k in range(d):
        piv = a_ref[k:k + 1, k:k + 1, :]                # (1, 1, TB)
        inv0 = pl.reciprocal(piv, approx=True)          # EUP slot, ~free
        inv_p = inv0 * (2.0 - piv * inv0)               # one Newton step -> f32 accurate
        row_a = a_ref[k:k + 1, :, :] * inv_p            # (1, D, TB) scaled pivot row
        rb = o_ref[k:k + 1, :] * inv_p[:, 0, :]         # (1, TB)
        col_k = a_ref[:, k:k + 1, :]                    # (D, 1, TB) pivot column
        a_ref[...] = a_ref[...] - col_k * row_a         # rank-1 update (in place)
        o_ref[...] = o_ref[...] - col_k[:, 0, :] * rb
        a_ref[k:k + 1, :, :] = row_a                    # restore normalized pivot row
        o_ref[k:k + 1, :] = rb


def _pick_batch_tile(padded_b, d, max_tile=1024, vmem_budget_bytes=16 << 20):
    """Largest 128-multiple tile that (a) divides the padded batch, (b) fits a
    conservative VMEM budget (double-buffered A + RHS + out, all f32; safe even
    under v5e's 16 MiB scoped default and v7x's 64 MiB physical), and (c) keeps
    >=2 grid steps when possible so ("parallel",) can shard batch tiles across
    both TensorCores on v7x."""
    per_lane = 4 * (2 * d * d + 4 * d)                  # bytes per batch lane
    cap = max(128, (vmem_budget_bytes // per_lane) // 128 * 128)
    tiles = [t for t in (1024, 512, 256, 128)
             if t <= max_tile and t <= cap and padded_b % t == 0]
    for t in tiles:
        if padded_b // t >= 2:
            return t
    return tiles[0] if tiles else 128


def jacobian_transpose_solve(jacob, g, max_batch_tile=1024, jacobT_batch_minor=False):
    """Solve Jacob[b]^T G[b] = g[b] for every batch element b (JacobMult.backward).

    Default path: `jacob` is (B, D, D) as produced by the module; a single
    wrapper transpose (2,1,0) realizes A = Jacob^T AND puts batch on the 128
    lanes.  If the producer already emits Jacob^T batch-minor as (D, D, B),
    pass jacobT_batch_minor=True and the HBM relayout is skipped entirely.
    # TODO(synk): teach concrete forward_transform implementations to emit the
    #             Jacobian batch-minor so the default transpose path never runs.
    """
    orig_dtype = g.dtype
    B, D = g.shape

    if jacobT_batch_minor:
        a = jacob                                       # (D, D, B), A = Jacob^T
    else:
        # A[i, j, b] = jacob[b, j, i]  ==  (Jacob_b^T)[i, j]
        a = jnp.transpose(jacob, (2, 1, 0))             # (D, D, B)
    a = a.astype(jnp.float32)                           # no-op for f32 Jacobians
    gt = jnp.transpose(g, (1, 0)).astype(jnp.float32)   # (D, B)

    # Pad ragged batches to a multiple of 128 lanes with identity Jacobian
    # blocks and zero RHS (keeps stores unmasked and VMEM bounded).
    Bp = ((B + 127) // 128) * 128
    if Bp != B:
        pad = Bp - B
        eye = jnp.broadcast_to(jnp.eye(D, dtype=jnp.float32)[:, :, None], (D, D, pad))
        a = jnp.concatenate([a, eye], axis=2)
        gt = jnp.concatenate([gt, jnp.zeros((D, pad), jnp.float32)], axis=1)

    tb = _pick_batch_tile(Bp, D, max_tile=max_batch_tile)
    grid = (Bp // tb,)

    # VMEM estimate: double-buffered A tile + double-buffered RHS + out (f32).
    est_bytes = 4 * tb * (2 * D * D + 4 * D) + (1 << 20)
    cp_kwargs = dict(dimension_semantics=("parallel",))
    if est_bytes > (16 << 20):                          # beyond v5e scoped default
        cp_kwargs["vmem_limit_bytes"] = int(est_bytes)

    out = pl.pallas_call(
        _jacob_solve_kernel,
        out_shape=jax.ShapeDtypeStruct((D, Bp), jnp.float32),
        grid_spec=pltpu.PrefetchScalarGridSpec(
            num_scalar_prefetch=0,
            grid=grid,
            in_specs=[
                pl.BlockSpec((D, D, tb), lambda b: (0, 0, b)),
                pl.BlockSpec((D, tb), lambda b: (0, b)),
            ],
            out_specs=pl.BlockSpec((D, tb), lambda b: (0, b)),
        ),
        # Batch tiles are independent -> shard across both TensorCores on v7x.
        compiler_params=pltpu.CompilerParams(**cp_kwargs),
    )(a, gt)
    return jnp.transpose(out, (1, 0))[:B].astype(orig_dtype)   # back to (B, D)


# --------------------------------------------------------------------------
# Pallas kernel: cached-path consistency check  max |y - cached|
# --------------------------------------------------------------------------
def _max_abs_diff_kernel(y_ref, yc_ref, o_ref):
    # y_ref/yc_ref: (TR, 128) lane-dense blocks; o_ref: (1, 128) partial max.
    d = jnp.abs(y_ref[...].astype(jnp.float32) - yc_ref[...].astype(jnp.float32))
    o_ref[...] = jnp.max(d, axis=0, keepdims=True)


def cache_consistency_check(y, y_cached, block_rows=1024):
    """Tiled, divide-free replacement for torch's `(y - cached).norm(-1).max()`.

    The torch expression is a p=-1 "norm" that only works by IEEE accident; the
    intended tolerance check is implemented as max|y - cached|.  Inputs are
    flattened to lane-dense (rows, 128) blocks, each grid step emits a (1, 128)
    partial max (parallel grid, no carried scalar), and one jnp.max over the
    tiny partial array finishes the reduction.
    """
    yf = y.reshape(-1).astype(jnp.float32)
    ycf = y_cached.reshape(-1).astype(jnp.float32)
    n = yf.shape[0]
    rem = (-n) % 1024                       # pad to full (8,128) vregs; |0-0|=0
    if rem:
        yf = jnp.pad(yf, (0, rem))
        ycf = jnp.pad(ycf, (0, rem))
        n += rem
    rows = n // 128
    yf = yf.reshape(rows, 128)
    ycf = ycf.reshape(rows, 128)

    tr = rows
    for t in (block_rows, 512, 256, 128, 64, 32, 16, 8):
        if t <= rows and rows % t == 0:
            tr = t
            break
    grid = rows // tr

    partial = pl.pallas_call(
        _max_abs_diff_kernel,
        out_shape=jax.ShapeDtypeStruct((grid, 128), jnp.float32),
        grid_spec=pltpu.PrefetchScalarGridSpec(
            num_scalar_prefetch=0,
            grid=(grid,),
            in_specs=[pl.BlockSpec((tr, 128), lambda i: (i, 0)),
                      pl.BlockSpec((tr, 128), lambda i: (i, 0))],
            out_specs=pl.BlockSpec((1, 128), lambda i: (i, 0)),
        ),
        # Per-block partials are independent -> both TCs on v7x.
        compiler_params=pltpu.CompilerParams(
            dimension_semantics=("parallel",)),
    )(yf, ycf)
    return jnp.max(partial)


# --------------------------------------------------------------------------
# custom-VJP analogues of the torch.autograd.Functions
# --------------------------------------------------------------------------
def jacob_mult(y, x, jacob):
    """JacobMult.apply: forward is identity on x; backward solves Jacob^T G = grad.

    `jacob` is captured by closure as a non-differentiated constant, so the
    backward never materializes a zeros_like(jacob) cotangent in HBM.
    """
    jacob = jax.lax.stop_gradient(jacob)
    # TODO(synk): if jacob must be a traced value under some jit/vjp
    #             compositions, thread it through custom_vjp residuals instead
    #             of the closure.

    @jax.custom_vjp
    def _jm(y, x):
        return x                      # JacobMult.forward: pure pass-through

    def _fwd(y, x):
        return x, None

    def _bwd(_, grad_output):
        G = jacobian_transpose_solve(jacob, grad_output)     # solve(Jacob^T, grad)
        return (G, grad_output)

    _jm.defvjp(_fwd, _bwd)
    return _jm(y, x)


@jax.custom_vjp
def neg_grad(x):
    return x                          # NegGrad.forward: identity, no copy kernel


def _neg_grad_fwd(x):
    return x, None


def _neg_grad_bwd(_, g):
    return (-g,)


neg_grad.defvjp(_neg_grad_fwd, _neg_grad_bwd)


# --------------------------------------------------------------------------
# AbstractInvertibleLayer (JAX / Pallas version)
# --------------------------------------------------------------------------
class AbstractInvertibleLayer:
    event_dim = 0
    grad_mode = True
    invertible = True

    def __init__(self):
        self.auxiliary_input = None
        self._cache = {'input': None, 'output': None, 'ldj': None, 'Jacob': None}
        self.last_cache_check = None

    def set_auxiliary(self, auxiliary):
        self.auxiliary_input = auxiliary

    # --- abstract pieces (kept abstract, as in the PyTorch class) ------------
    def forward_transform(self, input, auxiliary_input=None):
        raise NotImplementedError()

    def backward_transform(self, output, auxiliary_input=None, alpha=1.0):
        raise NotImplementedError()

    def forward(self, x, logp=None, auxiliary_input=None):
        raise NotImplementedError()

    def set_gradient_mode_transform(self, mode=True):
        self.grad_mode = mode

    # --- concrete machinery ---------------------------------------------------
    def log_abs_det_jacobian(self, x, y):
        if x is self._cache['input']:
            ldj = self._cache['ldj']
        else:
            if not NATIVE_GRADIENT:
                x = self._cache['input_detach']
                x = neg_grad(x)
            y, ldj, Jacob = self.forward_transform(
                x, auxiliary_input=self.auxiliary_input)
        return ldj[..., None]          # ldj.unsqueeze(-1)

    def inv(self, y):
        if y is self._cache['output'] or not NATIVE_GRADIENT:
            # Consistency check runs as a lane-dense Pallas partial-max reduction.
            # The value stays on-device (no float()/assert host sync in the hot
            # path); callers may assert on `self.last_cache_check`.
            self.last_cache_check = cache_consistency_check(y, self._cache['output'])
            if not NATIVE_GRADIENT:
                x = self._cache['input']
                Jacob = self._cache['Jacob']
                x = self.clone_and_copy_data(x, y, Jacob)
            else:
                x = self._cache['input']
            return x
        x, ldj = self.backward_transform(y, auxiliary_input=self.auxiliary_input)
        self._cache.update({'input': x, 'output': y, 'ldj': ldj})
        self.set_gradient_mode_transform(True)
        return x

    def _inverse(self, y):
        return self.inv(y)

    def __call__(self, x):
        if x is self._cache['input']:
            return self._cache['output']
        y, ldj, Jacob = self.forward_transform(
            x, auxiliary_input=self.auxiliary_input)
        self._cache.update({'input': x, 'output': y, 'ldj': ldj, 'Jacob': Jacob})
        return y

    def clone_and_copy_data(self, x, y, Jacob):
        return jacob_mult(y, x, Jacob)

    def erase_cache(self):
        self._cache = {k: None for k in self._cache}


# --------------------------------------------------------------------------
if __name__ == "__main__":
    key = jax.random.PRNGKey(0)
    B, D = 256, 8
    k1, k2, k3, k4, k5, k6 = jax.random.split(key, 6)

    x = jax.random.normal(k1, (B, D), dtype=jnp.float32)
    # deterministic, well-conditioned Jacobians (diagonally dominant)
    jac = (2.0 * jnp.broadcast_to(jnp.eye(D, dtype=jnp.float32), (B, D, D))
           + 0.1 * jax.random.normal(k2, (B, D, D), dtype=jnp.float32))
    ldj = jax.random.normal(k3, (B,), dtype=jnp.float32)

    layer = AbstractInvertibleLayer()
    # forward_transform is abstract; populate the cache exactly as a concrete
    # subclass would after a forward pass.
    y = x + 0.5        # stand-in transform output
    layer._cache.update({'input': x, 'output': y, 'ldj': ldj, 'Jacob': jac})

    # 1) clone_and_copy_data -> JacobMult.forward (identity pass-through)
    out = layer.clone_and_copy_data(x, y, jac)
    assert jnp.allclose(out, x)

    # 2) inv() cached path: lane-dense Pallas max|diff| consistency check + cache fetch
    x_rec = layer.inv(y)
    assert x_rec is x
    assert float(layer.last_cache_check) < 1e-6     # host sync only in the demo

    # 3) log_abs_det_jacobian cached path: ldj.unsqueeze(-1)
    ldj_out = layer.log_abs_det_jacobian(x, y)
    assert ldj_out.shape == (B, 1)

    # 4) Direct check of the batch-tiled in-place Gauss-Jordan solve kernel
    g_rand = jax.random.normal(k4, (B, D), dtype=jnp.float32)
    sol = jacobian_transpose_solve(jac, g_rand)
    ref = jnp.linalg.solve(jnp.swapaxes(jac, -2, -1), g_rand[..., None])[..., 0]
    assert jnp.allclose(sol, ref, atol=1e-3, rtol=1e-3)

    # 4b) Ragged batch -> identity/zero padding path
    B2 = 40
    jac2 = (2.0 * jnp.broadcast_to(jnp.eye(D, dtype=jnp.float32), (B2, D, D))
            + 0.1 * jax.random.normal(k5, (B2, D, D), dtype=jnp.float32))
    g2 = jax.random.normal(k6, (B2, D), dtype=jnp.float32)
    sol2 = jacobian_transpose_solve(jac2, g2)
    ref2 = jnp.linalg.solve(jnp.swapaxes(jac2, -2, -1), g2[..., None])[..., 0]
    assert jnp.allclose(sol2, ref2, atol=1e-3, rtol=1e-3)

    # 4c) Batch-minor producer path (no wrapper relayout transpose)
    aT = jnp.transpose(jac, (2, 1, 0))               # A = Jacob^T in (D, D, B)
    sol3 = jacobian_transpose_solve(aT, g_rand, jacobT_batch_minor=True)
    assert jnp.allclose(sol3, ref, atol=1e-3, rtol=1e-3)

    # 5) JacobMult.backward via custom_vjp: grad wrt y is solve(Jacob^T, ones)
    grads = jax.grad(lambda yy, xx: jnp.sum(jacob_mult(yy, xx, jac)),
                     argnums=(0, 1))(y, x)
    g_ones = jnp.ones((B, D), dtype=jnp.float32)
    ref_ones = jnp.linalg.solve(jnp.swapaxes(jac, -2, -1), g_ones[..., None])[..., 0]
    assert jnp.allclose(grads[0], ref_ones, atol=1e-3, rtol=1e-3)
    assert jnp.allclose(grads[1], g_ones)

    # 6) neg_grad: identity forward, negated gradient
    ng = neg_grad(x)
    assert jnp.allclose(ng, x)
    gneg = jax.grad(lambda z: jnp.sum(neg_grad(z)))(x)
    assert jnp.allclose(gneg, -jnp.ones_like(x))

    jax.block_until_ready((out, x_rec, ldj_out, sol, sol2, sol3, grads, ng, gneg))
    print("KERNEL_OK")
</pallas_src>

<mosaic_0001>
module attributes {stable_mosaic.version = 11 : i64} {
  func.func @_max_abs_diff_kernel(%arg0: i32, %arg1: memref<16x128xf32, #tpu.memory_space<vmem>>, %arg2: memref<16x128xf32, #tpu.memory_space<vmem>>, %arg3: memref<1x128xf32, #tpu.memory_space<vmem>>) attributes {dimension_semantics = [#tpu.dimension_semantics<parallel>], iteration_bounds = array<i64: 1>, scalar_prefetch = 0 : i64, scratch_operands = 0 : i64, tpu.core_type = #tpu.core_type<tc>, window_params = [{transform_indices = @transform_0, window_bounds = array<i64: 16, 128>}, {transform_indices = @transform_1, window_bounds = array<i64: 16, 128>}, {transform_indices = @transform_2, window_bounds = array<i64: 1, 128>}]} {
    %c0 = arith.constant 0 : index
    %c0_0 = arith.constant 0 : index
    %0 = vector.load %arg1[%c0, %c0_0] : memref<16x128xf32, #tpu.memory_space<vmem>>, vector<16x128xf32>
    %c0_1 = arith.constant 0 : index
    %c0_2 = arith.constant 0 : index
    %1 = vector.load %arg2[%c0_1, %c0_2] : memref<16x128xf32, #tpu.memory_space<vmem>>, vector<16x128xf32>
    %2 = arith.subf %0, %1 : vector<16x128xf32>
    %3 = math.absf %2 : vector<16x128xf32>
    %cst = arith.constant dense<0xFF800000> : vector<128xf32>
    %4 = vector.multi_reduction <maximumf>, %3, %cst [0] : vector<16x128xf32> to vector<128xf32>
    %5 = vector.shape_cast %4 : vector<128xf32> to vector<1x128xf32>
    %c0_3 = arith.constant 0 : index
    %c0_4 = arith.constant 0 : index
    %6 = vector.load %arg3[%c0_3, %c0_4] : memref<1x128xf32, #tpu.memory_space<vmem>>, vector<1x128xf32>
    tpu.vector_store %arg3[%c0_3, %c0_4], %5 {strides = array<i32>} : memref<1x128xf32, #tpu.memory_space<vmem>>, vector<1x128xf32>,
    return
  }
  func.func @transform_0(%arg0: i32) -> (i32, i32) {
    %c0_i32 = arith.constant 0 : i32
    %c0_i32_0 = arith.constant 0 : i32
    return %arg0, %c0_i32 : i32, i32
  }
  func.func @transform_1(%arg0: i32) -> (i32, i32) {
    %c0_i32 = arith.constant 0 : i32
    %c0_i32_0 = arith.constant 0 : i32
    return %arg0, %c0_i32 : i32, i32
  }
  func.func @transform_2(%arg0: i32) -> (i32, i32) {
    %c0_i32 = arith.constant 0 : i32
    %c0_i32_0 = arith.constant 0 : i32
    return %arg0, %c0_i32 : i32, i32
  }
}

</mosaic_0001>

<llo_original>
// kernel: tpu_custom_call.1
$region0: #{tpu_custom_call.1}
  #allocation0 [shape = 'u32[]', space=smem, size = 0x4, offset = 0x4, fixed_abs, tag = 'smem constant byte address 0x4 - core index']
  #allocation1 [shape = 'u32[144,128]{1,0:T(1,128)}', space=vmem, size = 0x12000, scoped, tag = 'internal scratch']
  %s0 = inlined_call_operand.hbm [shape: f32[16,128], index: 0, kind: input, shape index: {}]
  %s1 = inlined_call_operand.hbm [shape: f32[16,128], index: 1, kind: input, shape index: {}]
  %s2 = inlined_call_operand.hbm [shape: f32[1,128], index: 2, kind: output, shape index: {}]
  %s3 = sld [smem:[#allocation0]]
  $region26: #{tpu_custom_call.1} parent=0
    _
  %s5 = ssub.s32 1, %s3
  %s6 = scalar_select 0, %s5, %s3
  $region1: #{tpu_custom_call.1} parent=0
    #allocation2 [shape = 'u8[8192]{0}', space=vmem, size = 0x2000, scoped, tag = 'input window, operand 0, single buffered']
    #allocation3 [shape = 's32[1]{0}', space=sflag, size = 0x4, scoped, tag = 'scoped memory for tpu_custom_call.1']
    #allocation4 [shape = 's32[1]{0}', space=sflag, size = 0x4, scoped, tag = 'scoped memory for tpu_custom_call.1']
    #allocation5 [shape = 'u8[8192]{0}', space=vmem, size = 0x2000, scoped, tag = 'input window, operand 1, single buffered']
    #allocation6 [shape = 's32[1]{0}', space=sflag, size = 0x4, scoped, tag = 'scoped memory for tpu_custom_call.1']
    #allocation7 [shape = 'u8[512]{0}', space=vmem, size = 0x400, scoped, tag = 'output window, operand 0, single buffered']
    %7 = vsyncpa [#allocation3], 0
    %8 = vsyncpa [#allocation6], 0
    %9 = vsyncpa [#allocation4], 0
    // Predicated region
    $region2: #{tpu_custom_call.1} parent=1 // pred_check
      _
    $region3: #{tpu_custom_call.1} parent=1 // pred_check_branch
      %11 = sbr.rel (0) target = $region5
    $region4: #{tpu_custom_call.1} parent=1 // pred_region
      %s13 = ssub.s32 256, 256
      %14 = vsyncadd [#allocation3], %s13
      %s15 = sshll.u32 [#allocation2], 4
      %s16 = int_to_ptr.vmem [resolvable:$true] %s15
      %21 = dma.hbm_to_vmem [thread:$0]  %s0, 256, %s16, [#allocation3], 128, 128, 8
    $region5: #{tpu_custom_call.1} parent=1 // pred_fallthru
      _
    // Predicated region
    $region6: #{tpu_custom_call.1} parent=1 // pred_check
      _
    $region7: #{tpu_custom_call.1} parent=1 // pred_check_branch
      %23 = sbr.rel (0) target = $region9
    $region8: #{tpu_custom_call.1} parent=1 // pred_region
      %s25 = ssub.s32 256, 256
      %26 = vsyncadd [#allocation6], %s25
      %s27 = sshll.u32 [#allocation5], 4
      %s28 = int_to_ptr.vmem [resolvable:$true] %s27
      %33 = dma.hbm_to_vmem [thread:$0]  %s1, 256, %s28, [#allocation6], 128, 128, 8
    $region9: #{tpu_custom_call.1} parent=1 // pred_fallthru
      _
    // Predicated region
    $region10: #{tpu_custom_call.1} parent=1 // pred_check
      _
    $region11: #{tpu_custom_call.1} parent=1 // pred_check_branch
      %35 = sbr.rel (0) target = $region13
    $region12: #{tpu_custom_call.1} parent=1 // pred_region
      %36 = dma.done [#allocation3], 256
    $region13: #{tpu_custom_call.1} parent=1 // pred_fallthru
      _
    // Predicated region
    $region14: #{tpu_custom_call.1} parent=1 // pred_check
      _
    $region15: #{tpu_custom_call.1} parent=1 // pred_check_branch
      %38 = sbr.rel (0) target = $region17
    $region16: #{tpu_custom_call.1} parent=1 // pred_region
      %39 = dma.done [#allocation6], 256
    $region17: #{tpu_custom_call.1} parent=1 // pred_fallthru
      _
    %v40 = vld [vmem:[#allocation2] sm:$0xff]
    %v41 = vld [vmem:[#allocation2 + $0x8] sm:$0xff]
    %v42 = vld [vmem:[#allocation5] sm:$0xff]
    %v43 = vld [vmem:[#allocation5 + $0x8] sm:$0xff]
    %v44 = vsub.f32 %v40, %v42
    %v45 = vsub.f32 %v41, %v43
    %v46 = vand.u32 2147483647, %v44
    %v47 = vand.u32 2147483647, %v45
    %v48 = vmax.f32 %v46, %v47
    %v49 = vrot.slane %v48, 4
    %v50 = vmax.f32 %v48, %v49
    %v51 = vrot.slane %v50, 2
    %v52 = vmax.f32 %v50, %v51
    %v53 = vrot.slane %v52, 1
    %v54 = vmax.f32 %v52, %v53
    %55 = vst [vmem:[#allocation7] sm:$0x1] %v54
    // Predicated region
    $region18: #{tpu_custom_call.1} parent=1 // pred_check
      _
    $region19: #{tpu_custom_call.1} parent=1 // pred_check_branch
      %57 = sbr.rel (0) target = $region21
    $region20: #{tpu_custom_call.1} parent=1 // pred_region
      %s59 = ssub.s32 16, 16
      %60 = vsyncadd [#allocation4], %s59
      %s62 = sshll.u32 [#allocation7], 4
      %s63 = int_to_ptr.vmem [resolvable:$true] %s62
      %65 = dma.vmem_to_hbm [thread:$0]  %s63, 16, %s2, [#allocation4]
    $region21: #{tpu_custom_call.1} parent=1 // pred_fallthru
      _
    // Predicated region
    $region22: #{tpu_custom_call.1} parent=1 // pred_check
      _
    $region23: #{tpu_custom_call.1} parent=1 // pred_check_branch
      %67 = sbr.rel (0) target = $region25
    $region24: #{tpu_custom_call.1} parent=1 // pred_region
      %68 = dma.done [#allocation4], 16
    $region25: #{tpu_custom_call.1} parent=1 // pred_fallthru
      _
    %69 = vsyncpa [#allocation3], 1
    %70 = vsyncpa [#allocation6], 1
    %71 = vsyncpa [#allocation4], 1

</llo_original>
